<compile_context>
chip_gen: v6e
topology: v6e:2x2x1
jax: 0.10.0
libtpu: 0.0.40
codegen_flags: <defaults>
</compile_context>

<pallas_src>
import jax
import jax.numpy as jnp
from jax.experimental import pallas as pl
from jax.experimental.pallas import tpu as pltpu

NUM_HEADS = 4
LN_EPS = 1e-5
LANES = 128


def attention_fusion_kernel(ego_ref, cut_ref, wqkv_ref, bqkv_ref, hmask_ref, lnmask_ref,
                            wo_ref, bo_ref, gamma_ref, beta_ref, out_ref):
    """One batch tile (lane-packed): attention over S=2 tokens, residual + LN, token mean."""
    R = ego_ref.shape[0]
    L = LANES

    # Token-stacked, lane-packed activations: rows [0:R] = token 0 (ego), [R:2R] = token 1.
    x = jnp.concatenate([ego_ref[...], cut_ref[...]], axis=0).astype(jnp.float32)  # (2R,128)

    # Fused QKV projection (attention scale folded into the Q block of the weights/bias).
    # Block-diagonal weights keep the 4 packed batch elements per row independent; Q/K/V
    # output segments are 128-lane aligned, so the slices below are free views.
    wqkv = wqkv_ref[...]                                        # (128, 384)
    bqkv = bqkv_ref[...].astype(jnp.float32)                    # (1, 384)
    qkv = jnp.dot(x.astype(wqkv.dtype), wqkv,
                  preferred_element_type=jnp.float32) + bqkv    # (2R, 384)
    q = qkv[:, 0:L]
    k = qkv[:, L:2 * L]
    v = qkv[:, 2 * L:3 * L]

    kd = k[:R] - k[R:]                                          # (R,128)  k_token0 - k_token1
    vd = v[:R] - v[R:]                                          # (R,128)  v_token0 - v_token1
    v1 = v[R:]                                                  # (R,128)  v_token1

    # S=2 softmax per head: p = sigmoid(q . (k0-k1)) within each 8-lane head segment.
    # The segmented sum + broadcast over the head's lanes is one matmul against the
    # block-diagonal head mask; tokens stay stacked so it's a single MXU push.
    hmask = hmask_ref[...]                                      # (128,128)
    kd2 = jnp.concatenate([kd, kd], axis=0)                     # (2R,128)
    d = jnp.dot((q * kd2).astype(hmask.dtype), hmask,
                preferred_element_type=jnp.float32)             # (2R,128) per-head logit diff
    p = jax.nn.sigmoid(d)                                       # attention weight on token 0
    vd2 = jnp.concatenate([vd, vd], axis=0)
    v12 = jnp.concatenate([v1, v1], axis=0)
    ctx = v12 + p * vd2                                         # (2R,128) per-head contexts

    # Output projection (block-diagonal Wo.T), residual.
    wo = wo_ref[...]                                            # (128,128)
    bo = bo_ref[...].astype(jnp.float32)                        # (1,128)
    att = jnp.dot(ctx.astype(wo.dtype), wo,
                  preferred_element_type=jnp.float32) + bo
    y = att + x

    # LayerNorm over each element's 32-lane segment (per-segment mean/var via the
    # block-diagonal mean mask; kept in f32 regardless of the MXU input dtype).
    lnmask = lnmask_ref[...]                                    # (128,128) f32
    mu = jnp.dot(y, lnmask, preferred_element_type=jnp.float32)
    yc = y - mu
    var = jnp.dot(yc * yc, lnmask, preferred_element_type=jnp.float32)
    yn = yc * jax.lax.rsqrt(var + LN_EPS)
    z = yn * gamma_ref[...].astype(jnp.float32) + beta_ref[...].astype(jnp.float32)

    # Mean over the 2 stacked tokens: the 0.5 is folded into gamma/beta in the wrapper.
    out_ref[...] = (z[:R] + z[R:]).astype(out_ref.dtype)


def _round_up(x, m):
    return ((x + m - 1) // m) * m


def attention_fusion(ego, cut, params, *, block_b=4096, use_bf16_mxu=False):
    """params: (wq, wk, wv, bq, bk, bv, wo, bo, gamma, beta) in PyTorch layout."""
    wq, wk, wv, bq, bk, bv, wo, bo, gamma, beta = params
    B, H = ego.shape
    assert LANES % H == 0 and H % NUM_HEADS == 0
    PACK = LANES // H                       # batch rows packed per 128-lane row (4 for H=32)
    ROW = 8 * PACK                          # batch-tile granularity (sublane alignment)
    hd = H // NUM_HEADS
    scale = 1.0 / jnp.sqrt(jnp.float32(hd))

    # ---- lane-packed, block-diagonal parameters (built once, resident in VMEM) ----
    eyeP = jnp.eye(PACK, dtype=jnp.float32)
    bdiag = lambda m: jnp.kron(eyeP, m.astype(jnp.float32))                  # (128,128)
    tileL = lambda p: jnp.tile(p.reshape(1, H).astype(jnp.float32), (1, PACK))  # (1,128)

    wqkv_p = jnp.concatenate([bdiag(wq.T * scale), bdiag(wk.T), bdiag(wv.T)], axis=1)  # (128,384)
    bqkv_p = jnp.concatenate([tileL(bq * scale), tileL(bk), tileL(bv)], axis=1)        # (1,384)
    wo_p = bdiag(wo.T)                                                                 # (128,128)
    bo_p = tileL(bo)
    gamma_p = tileL(gamma) * 0.5            # fold the final mean over the 2 stacked tokens
    beta_p = tileL(beta) * 0.5

    lane = jnp.arange(LANES)
    hmask = (lane[:, None] // hd == lane[None, :] // hd).astype(jnp.float32)      # per-head sum
    lnmask = (lane[:, None] // H == lane[None, :] // H).astype(jnp.float32) / H   # per-row mean

    mxu_dtype = jnp.bfloat16 if use_bf16_mxu else jnp.float32
    wqkv_p = wqkv_p.astype(mxu_dtype)
    wo_p = wo_p.astype(mxu_dtype)
    hmask = hmask.astype(mxu_dtype)
    # lnmask stays f32: LayerNorm statistics in full precision.

    # ---- batch tiling: big lane-dense tiles; keep >=2 grid steps for megacore when B is big ----
    B_pad_min = _round_up(B, ROW)
    TB = max(ROW, (min(block_b, B_pad_min) // ROW) * ROW)
    if B > 4 * ROW and TB >= B_pad_min:
        # A single tile would cover the whole batch: split in two so a v7x megacore
        # ("parallel" grid axis) can shard the work across both TensorCores.
        TB = max(ROW, _round_up((B + 1) // 2, ROW))
    n_tiles = -(-B // TB)
    Bp = n_tiles * TB

    if Bp != B:
        pad = ((0, Bp - B), (0, 0))
        # Padded (zero) tail rows flow through attention/LayerNorm (finite values, eps in
        # the rsqrt) and are discarded below — never read them as real outputs.
        ego = jnp.pad(ego, pad)
        cut = jnp.pad(cut, pad)
    rows = Bp // PACK
    r_tile = TB // PACK
    ego_pk = ego.reshape(rows, LANES)       # pack PACK batch rows per 128-lane row (pure view)
    cut_pk = cut.reshape(rows, LANES)

    x_spec = pl.BlockSpec((r_tile, LANES), lambda b: (b, 0))
    const = lambda shape: pl.BlockSpec(shape, lambda b: (0, 0))

    # Advisory cost hint (token-stacked packed rows through 5 MXU ops + sigmoid/rsqrt).
    rows2 = 2 * (Bp // PACK)
    cost = pl.CostEstimate(
        flops=2 * rows2 * LANES * (3 * LANES + 4 * LANES),
        transcendentals=2 * rows2 * LANES,
        bytes_accessed=(3 * Bp * H + 7 * LANES * LANES + 8 * LANES) * 4,
    )

    out = pl.pallas_call(
        attention_fusion_kernel,
        out_shape=jax.ShapeDtypeStruct((rows, LANES), ego.dtype),
        grid_spec=pltpu.PrefetchScalarGridSpec(
            num_scalar_prefetch=0,
            grid=(n_tiles,),
            in_specs=[
                x_spec, x_spec,                                        # ego, cut (lane-packed)
                const((LANES, 3 * LANES)), const((1, 3 * LANES)),      # fused block-diag Wqkv, b
                const((LANES, LANES)), const((LANES, LANES)),          # head mask, LN mean mask
                const((LANES, LANES)),                                 # block-diag Wo
                const((1, LANES)), const((1, LANES)), const((1, LANES)),  # bo, 0.5*gamma, 0.5*beta
            ],
            out_specs=pl.BlockSpec((r_tile, LANES), lambda b: (b, 0)),
        ),
        compiler_params=pltpu.CompilerParams(dimension_semantics=("parallel",)),
        cost_estimate=cost,
    )(ego_pk, cut_pk, wqkv_p, bqkv_p, hmask, lnmask, wo_p, bo_p, gamma_p, beta_p)

    return out.reshape(Bp, H)[:B]


def attention_fusion_reference(ego, cut, params):
    """Pure-JAX mirror of the PyTorch forward, for correctness checking."""
    wq, wk, wv, bq, bk, bv, wo, bo, gamma, beta = params
    x = jnp.stack([ego, cut], axis=1)               # (B, S, H)
    B, S, H = x.shape
    hd = H // NUM_HEADS
    q = x @ wq.T + bq
    k = x @ wk.T + bk
    v = x @ wv.T + bv
    q = q.reshape(B, S, NUM_HEADS, hd).transpose(0, 2, 1, 3)
    k = k.reshape(B, S, NUM_HEADS, hd).transpose(0, 2, 1, 3)
    v = v.reshape(B, S, NUM_HEADS, hd).transpose(0, 2, 1, 3)
    s = (q @ jnp.swapaxes(k, -1, -2)) / jnp.sqrt(jnp.float32(hd))
    p = jax.nn.softmax(s, axis=-1)
    ctx = (p @ v).transpose(0, 2, 1, 3).reshape(B, S, H)
    att = ctx @ wo.T + bo
    y = att + x
    mu = y.mean(-1, keepdims=True)
    var = ((y - mu) ** 2).mean(-1, keepdims=True)
    yn = (y - mu) / jnp.sqrt(var + LN_EPS) * gamma + beta
    return yn.mean(axis=1)


if __name__ == "__main__":
    H = 32   # hidden_channels=32, num_heads=4 -> head_dim=8

    key = jax.random.PRNGKey(0)
    k_ego, k_cut, k_ipw, k_ipb, k_ow, k_ob = jax.random.split(key, 6)

    # deterministic synthetic parameters (shapes from nn.MultiheadAttention / nn.LayerNorm)
    in_proj_w = jax.random.normal(k_ipw, (3 * H, H), dtype=jnp.float32) * 0.1
    in_proj_b = jax.random.normal(k_ipb, (3 * H,), dtype=jnp.float32) * 0.1
    out_proj_w = jax.random.normal(k_ow, (H, H), dtype=jnp.float32) * 0.1
    out_proj_b = jax.random.normal(k_ob, (H,), dtype=jnp.float32) * 0.1
    gamma = jnp.ones((H,), dtype=jnp.float32)
    beta = jnp.zeros((H,), dtype=jnp.float32)

    params = (in_proj_w[0:H], in_proj_w[H:2 * H], in_proj_w[2 * H:3 * H],
              in_proj_b[0:H], in_proj_b[H:2 * H], in_proj_b[2 * H:3 * H],
              out_proj_w, out_proj_b, gamma, beta)

    # 1) Small-batch case from the module spec (single tile, lane-packed with padding).
    B = 2
    ego = jax.random.normal(k_ego, (B, H), dtype=jnp.float32)
    cut = jax.random.normal(k_cut, (B, H), dtype=jnp.float32)
    out = jax.block_until_ready(attention_fusion(ego, cut, params))
    ref = attention_fusion_reference(ego, cut, params)
    assert out.shape == (B, H)
    assert jnp.allclose(out, ref, atol=1e-4, rtol=1e-4), "mismatch vs reference (B=2, f32)"

    # 2) Larger batch exercising the multi-tile grid + tail-padding path.
    B2 = 300
    k_e2, k_c2 = jax.random.split(jax.random.PRNGKey(1))
    ego2 = jax.random.normal(k_e2, (B2, H), dtype=jnp.float32)
    cut2 = jax.random.normal(k_c2, (B2, H), dtype=jnp.float32)
    out2 = jax.block_until_ready(attention_fusion(ego2, cut2, params, block_b=256))
    ref2 = attention_fusion_reference(ego2, cut2, params)
    assert out2.shape == (B2, H)
    assert jnp.allclose(out2, ref2, atol=1e-4, rtol=1e-4), "mismatch vs reference (B=300, f32)"

    # 3) bf16 MXU-input path (recommended on v6e/v7x): f32 accumulation + f32 LayerNorm,
    #    validated against a looser tolerance than the f32 path.
    out3 = jax.block_until_ready(attention_fusion(ego2, cut2, params, use_bf16_mxu=True))
    assert out3.shape == (B2, H)
    assert bool(jnp.all(jnp.isfinite(out3)))
    assert jnp.allclose(out3, ref2, atol=5e-2, rtol=5e-2), "mismatch vs reference (bf16 MXU)"

    print("KERNEL_OK")
</pallas_src>

<mosaic_0001>
module attributes {stable_mosaic.version = 11 : i64} {
  func.func @attention_fusion_kernel(%arg0: i32, %arg1: memref<8x128xf32, #tpu.memory_space<vmem>>, %arg2: memref<8x128xf32, #tpu.memory_space<vmem>>, %arg3: memref<128x384xf32, #tpu.memory_space<vmem>>, %arg4: memref<1x384xf32, #tpu.memory_space<vmem>>, %arg5: memref<128x128xf32, #tpu.memory_space<vmem>>, %arg6: memref<128x128xf32, #tpu.memory_space<vmem>>, %arg7: memref<128x128xf32, #tpu.memory_space<vmem>>, %arg8: memref<1x128xf32, #tpu.memory_space<vmem>>, %arg9: memref<1x128xf32, #tpu.memory_space<vmem>>, %arg10: memref<1x128xf32, #tpu.memory_space<vmem>>, %arg11: memref<8x128xf32, #tpu.memory_space<vmem>>) attributes {dimension_semantics = [#tpu.dimension_semantics<parallel>], iteration_bounds = array<i64: 1>, scalar_prefetch = 0 : i64, scratch_operands = 0 : i64, tpu.core_type = #tpu.core_type<tc>, window_params = [{transform_indices = @transform_0, window_bounds = array<i64: 8, 128>}, {transform_indices = @transform_1, window_bounds = array<i64: 8, 128>}, {pipeline_mode = #tpu.pipeline_mode<synchronous>, transform_indices = @transform_2, window_bounds = array<i64: 128, 384>}, {pipeline_mode = #tpu.pipeline_mode<synchronous>, transform_indices = @transform_3, window_bounds = array<i64: 1, 384>}, {pipeline_mode = #tpu.pipeline_mode<synchronous>, transform_indices = @transform_4, window_bounds = array<i64: 128, 128>}, {pipeline_mode = #tpu.pipeline_mode<synchronous>, transform_indices = @transform_5, window_bounds = array<i64: 128, 128>}, {pipeline_mode = #tpu.pipeline_mode<synchronous>, transform_indices = @transform_6, window_bounds = array<i64: 128, 128>}, {pipeline_mode = #tpu.pipeline_mode<synchronous>, transform_indices = @transform_7, window_bounds = array<i64: 1, 128>}, {pipeline_mode = #tpu.pipeline_mode<synchronous>, transform_indices = @transform_8, window_bounds = array<i64: 1, 128>}, {pipeline_mode = #tpu.pipeline_mode<synchronous>, transform_indices = @transform_9, window_bounds = array<i64: 1, 128>}, {transform_indices = @transform_10, window_bounds = array<i64: 8, 128>}]} {
    %c0 = arith.constant 0 : index
    %c0_0 = arith.constant 0 : index
    %0 = vector.load %arg1[%c0, %c0_0] : memref<8x128xf32, #tpu.memory_space<vmem>>, vector<8x128xf32>
    %c0_1 = arith.constant 0 : index
    %c0_2 = arith.constant 0 : index
    %1 = vector.load %arg2[%c0_1, %c0_2] : memref<8x128xf32, #tpu.memory_space<vmem>>, vector<8x128xf32>
    %2 = tpu.concatenate %0, %1 in 0 : vector<8x128xf32>, vector<8x128xf32> -> vector<16x128xf32>
    %c0_3 = arith.constant 0 : index
    %c0_4 = arith.constant 0 : index
    %3 = vector.load %arg3[%c0_3, %c0_4] : memref<128x384xf32, #tpu.memory_space<vmem>>, vector<128x384xf32>
    %c0_5 = arith.constant 0 : index
    %c0_6 = arith.constant 0 : index
    %4 = vector.load %arg4[%c0_5, %c0_6] : memref<1x384xf32, #tpu.memory_space<vmem>>, vector<1x384xf32>
    %cst = arith.constant dense<0.000000e+00> : vector<16x384xf32>
    %5 = tpu.matmul %2, %3, %cst {dimension_numbers = #tpu.dot_dimension_numbers<[1], [0], [0], [1], [0, 0, 1, 1], [], []>} : vector<16x128xf32>, vector<128x384xf32>, vector<16x384xf32> -> vector<16x384xf32>
    %6 = vector.broadcast %4 : vector<1x384xf32> to vector<16x384xf32>
    %7 = arith.addf %5, %6 : vector<16x384xf32>
    %8 = vector.extract_strided_slice %7 {offsets = [0, 0], sizes = [16, 128], strides = [1, 1]} : vector<16x384xf32> to vector<16x128xf32>
    %9 = vector.extract_strided_slice %7 {offsets = [0, 128], sizes = [16, 128], strides = [1, 1]} : vector<16x384xf32> to vector<16x128xf32>
    %10 = vector.extract_strided_slice %7 {offsets = [0, 256], sizes = [16, 128], strides = [1, 1]} : vector<16x384xf32> to vector<16x128xf32>
    %11 = vector.extract_strided_slice %9 {offsets = [0, 0], sizes = [8, 128], strides = [1, 1]} : vector<16x128xf32> to vector<8x128xf32>
    %12 = vector.extract_strided_slice %9 {offsets = [8, 0], sizes = [8, 128], strides = [1, 1]} : vector<16x128xf32> to vector<8x128xf32>
    %13 = arith.subf %11, %12 : vector<8x128xf32>
    %14 = vector.extract_strided_slice %10 {offsets = [0, 0], sizes = [8, 128], strides = [1, 1]} : vector<16x128xf32> to vector<8x128xf32>
    %15 = vector.extract_strided_slice %10 {offsets = [8, 0], sizes = [8, 128], strides = [1, 1]} : vector<16x128xf32> to vector<8x128xf32>
    %16 = arith.subf %14, %15 : vector<8x128xf32>
    %17 = vector.extract_strided_slice %10 {offsets = [8, 0], sizes = [8, 128], strides = [1, 1]} : vector<16x128xf32> to vector<8x128xf32>
    %c0_7 = arith.constant 0 : index
    %c0_8 = arith.constant 0 : index
    %18 = vector.load %arg5[%c0_7, %c0_8] : memref<128x128xf32, #tpu.memory_space<vmem>>, vector<128x128xf32>
    %19 = tpu.concatenate %13, %13 in 0 : vector<8x128xf32>, vector<8x128xf32> -> vector<16x128xf32>
    %20 = arith.mulf %8, %19 : vector<16x128xf32>
    %cst_9 = arith.constant dense<0.000000e+00> : vector<16x128xf32>
    %21 = tpu.matmul %20, %18, %cst_9 {dimension_numbers = #tpu.dot_dimension_numbers<[1], [0], [0], [1], [0, 0, 1, 1], [], []>} : vector<16x128xf32>, vector<128x128xf32>, vector<16x128xf32> -> vector<16x128xf32>
    %22 = arith.negf %21 : vector<16x128xf32>
    %23 = math.exp %22 : vector<16x128xf32>
    %cst_10 = arith.constant 1.000000e+00 : f32
    %24 = vector.broadcast %cst_10 : f32 to vector<16x128xf32>
    %25 = arith.addf %24, %23 : vector<16x128xf32>
    %26 = arith.divf %24, %25 : vector<16x128xf32>
    %27 = tpu.concatenate %16, %16 in 0 : vector<8x128xf32>, vector<8x128xf32> -> vector<16x128xf32>
    %28 = tpu.concatenate %17, %17 in 0 : vector<8x128xf32>, vector<8x128xf32> -> vector<16x128xf32>
    %29 = arith.mulf %26, %27 : vector<16x128xf32>
    %30 = arith.addf %28, %29 : vector<16x128xf32>
    %c0_11 = arith.constant 0 : index
    %c0_12 = arith.constant 0 : index
    %31 = vector.load %arg7[%c0_11, %c0_12] : memref<128x128xf32, #tpu.memory_space<vmem>>, vector<128x128xf32>
    %c0_13 = arith.constant 0 : index
    %c0_14 = arith.constant 0 : index
    %32 = vector.load %arg8[%c0_13, %c0_14] : memref<1x128xf32, #tpu.memory_space<vmem>>, vector<1x128xf32>
    %cst_15 = arith.constant dense<0.000000e+00> : vector<16x128xf32>
    %33 = tpu.matmul %30, %31, %cst_15 {dimension_numbers = #tpu.dot_dimension_numbers<[1], [0], [0], [1], [0, 0, 1, 1], [], []>} : vector<16x128xf32>, vector<128x128xf32>, vector<16x128xf32> -> vector<16x128xf32>
    %34 = vector.broadcast %32 : vector<1x128xf32> to vector<16x128xf32>
    %35 = arith.addf %33, %34 : vector<16x128xf32>
    %36 = arith.addf %35, %2 : vector<16x128xf32>
    %c0_16 = arith.constant 0 : index
    %c0_17 = arith.constant 0 : index
    %37 = vector.load %arg6[%c0_16, %c0_17] : memref<128x128xf32, #tpu.memory_space<vmem>>, vector<128x128xf32>
    %cst_18 = arith.constant dense<0.000000e+00> : vector<16x128xf32>
    %38 = tpu.matmul %36, %37, %cst_18 {dimension_numbers = #tpu.dot_dimension_numbers<[1], [0], [0], [1], [0, 0, 1, 1], [], []>} : vector<16x128xf32>, vector<128x128xf32>, vector<16x128xf32> -> vector<16x128xf32>
    %39 = arith.subf %36, %38 : vector<16x128xf32>
    %40 = arith.mulf %39, %39 : vector<16x128xf32>
    %cst_19 = arith.constant dense<0.000000e+00> : vector<16x128xf32>
    %41 = tpu.matmul %40, %37, %cst_19 {dimension_numbers = #tpu.dot_dimension_numbers<[1], [0], [0], [1], [0, 0, 1, 1], [], []>} : vector<16x128xf32>, vector<128x128xf32>, vector<16x128xf32> -> vector<16x128xf32>
    %cst_20 = arith.constant 9.99999974E-6 : f32
    %42 = vector.broadcast %cst_20 : f32 to vector<16x128xf32>
    %43 = arith.addf %41, %42 : vector<16x128xf32>
    %44 = math.rsqrt %43 : vector<16x128xf32>
    %45 = arith.mulf %39, %44 : vector<16x128xf32>
    %c0_21 = arith.constant 0 : index
    %c0_22 = arith.constant 0 : index
    %46 = vector.load %arg9[%c0_21, %c0_22] : memref<1x128xf32, #tpu.memory_space<vmem>>, vector<1x128xf32>
    %47 = vector.broadcast %46 : vector<1x128xf32> to vector<16x128xf32>
    %48 = arith.mulf %45, %47 : vector<16x128xf32>
    %c0_23 = arith.constant 0 : index
    %c0_24 = arith.constant 0 : index
    %49 = vector.load %arg10[%c0_23, %c0_24] : memref<1x128xf32, #tpu.memory_space<vmem>>, vector<1x128xf32>
    %50 = vector.broadcast %49 : vector<1x128xf32> to vector<16x128xf32>
    %51 = arith.addf %48, %50 : vector<16x128xf32>
    %52 = vector.extract_strided_slice %51 {offsets = [0, 0], sizes = [8, 128], strides = [1, 1]} : vector<16x128xf32> to vector<8x128xf32>
    %53 = vector.extract_strided_slice %51 {offsets = [8, 0], sizes = [8, 128], strides = [1, 1]} : vector<16x128xf32> to vector<8x128xf32>
    %54 = arith.addf %52, %53 : vector<8x128xf32>
    %c0_25 = arith.constant 0 : index
    %c0_26 = arith.constant 0 : index
    %55 = vector.load %arg11[%c0_25, %c0_26] : memref<8x128xf32, #tpu.memory_space<vmem>>, vector<8x128xf32>
    tpu.vector_store %arg11[%c0_25, %c0_26], %54 {strides = array<i32>} : memref<8x128xf32, #tpu.memory_space<vmem>>, vector<8x128xf32>,
    return
  }
  func.func @transform_0(%arg0: i32) -> (i32, i32) {
    %c0_i32 = arith.constant 0 : i32
    %c0_i32_0 = arith.constant 0 : i32
    return %arg0, %c0_i32 : i32, i32
  }
  func.func @transform_1(%arg0: i32) -> (i32, i32) {
    %c0_i32 = arith.constant 0 : i32
    %c0_i32_0 = arith.constant 0 : i32
    return %arg0, %c0_i32 : i32, i32
  }
  func.func @transform_2(%arg0: i32) -> (i32, i32) {
    %c0_i32 = arith.constant 0 : i32
    %c0_i32_0 = arith.constant 0 : i32
    %c0_i32_1 = arith.constant 0 : i32
    return %c0_i32, %c0_i32_0 : i32, i32
  }
  func.func @transform_3(%arg0: i32) -> (i32, i32) {
    %c0_i32 = arith.constant 0 : i32
    %c0_i32_0 = arith.constant 0 : i32
    %c0_i32_1 = arith.constant 0 : i32
    return %c0_i32, %c0_i32_0 : i32, i32
  }
  func.func @transform_4(%arg0: i32) -> (i32, i32) {
    %c0_i32 = arith.constant 0 : i32
    %c0_i32_0 = arith.constant 0 : i32
    %c0_i32_1 = arith.constant 0 : i32
    return %c0_i32, %c0_i32_0 : i32, i32
  }
  func.func @transform_5(%arg0: i32) -> (i32, i32) {
    %c0_i32 = arith.constant 0 : i32
    %c0_i32_0 = arith.constant 0 : i32
    %c0_i32_1 = arith.constant 0 : i32
    return %c0_i32, %c0_i32_0 : i32, i32
  }
  func.func @transform_6(%arg0: i32) -> (i32, i32) {
    %c0_i32 = arith.constant 0 : i32
    %c0_i32_0 = arith.constant 0 : i32
    %c0_i32_1 = arith.constant 0 : i32
    return %c0_i32, %c0_i32_0 : i32, i32
  }
  func.func @transform_7(%arg0: i32) -> (i32, i32) {
    %c0_i32 = arith.constant 0 : i32
    %c0_i32_0 = arith.constant 0 : i32
    %c0_i32_1 = arith.constant 0 : i32
    return %c0_i32, %c0_i32_0 : i32, i32
  }
  func.func @transform_8(%arg0: i32) -> (i32, i32) {
    %c0_i32 = arith.constant 0 : i32
    %c0_i32_0 = arith.constant 0 : i32
    %c0_i32_1 = arith.constant 0 : i32
    return %c0_i32, %c0_i32_0 : i32, i32
  }
  func.func @transform_9(%arg0: i32) -> (i32, i32) {
    %c0_i32 = arith.constant 0 : i32
    %c0_i32_0 = arith.constant 0 : i32
    %c0_i32_1 = arith.constant 0 : i32
    return %c0_i32, %c0_i32_0 : i32, i32
  }
  func.func @transform_10(%arg0: i32) -> (i32, i32) {
    %c0_i32 = arith.constant 0 : i32
    %c0_i32_0 = arith.constant 0 : i32
    return %arg0, %c0_i32 : i32, i32
  }
}

</mosaic_0001>

<llo_original>
// kernel: tpu_custom_call.1
$region0: #{tpu_custom_call.1}
  #allocation0 [shape = 'u32[]', space=smem, size = 0x4, offset = 0x4, fixed_abs, tag = 'smem constant byte address 0x4 - core index']
  #allocation1 [shape = 'u32[144,128]{1,0:T(1,128)}', space=vmem, size = 0x12000, scoped, tag = 'internal scratch']
  %s0 = inlined_call_operand.hbm [shape: f32[8,128], index: 0, kind: input, shape index: {}]
  %s1 = inlined_call_operand.hbm [shape: f32[8,128], index: 1, kind: input, shape index: {}]
  %s2 = inlined_call_operand.hbm [shape: f32[128,384], index: 2, kind: input, shape index: {}]
  %s3 = inlined_call_operand.vmem [shape: f32[1,384], index: 3, kind: input, shape index: {}]
  %s4 = inlined_call_operand.hbm [shape: f32[128,128], index: 4, kind: input, shape index: {}]
  %s5 = inlined_call_operand.hbm [shape: f32[128,128], index: 5, kind: input, shape index: {}]
  %s6 = inlined_call_operand.hbm [shape: f32[128,128], index: 6, kind: input, shape index: {}]
  %s7 = inlined_call_operand.vmem [shape: f32[1,128], index: 7, kind: input, shape index: {}]
  %s8 = inlined_call_operand.vmem [shape: f32[1,128], index: 8, kind: input, shape index: {}]
  %s9 = inlined_call_operand.vmem [shape: f32[1,128], index: 9, kind: input, shape index: {}]
  %s10 = inlined_call_operand.hbm [shape: f32[8,128], index: 10, kind: output, shape index: {}]
  %s11 = sld [smem:[#allocation0]]
  $region74: #{tpu_custom_call.1} parent=0
    _
  %s13 = ssub.s32 1, %s11
  %s14 = scalar_select 0, %s13, %s11
  $region1: #{tpu_custom_call.1} parent=0
    #allocation2 [shape = 'u8[4096]{0}', space=vmem, size = 0x1000, scoped, tag = 'input window, operand 0, single buffered']
    #allocation3 [shape = 's32[1]{0}', space=sflag, size = 0x4, scoped, tag = 'scoped memory for tpu_custom_call.1']
    #allocation4 [shape = 's32[1]{0}', space=sflag, size = 0x4, scoped, tag = 'scoped memory for tpu_custom_call.1']
    #allocation5 [shape = 'u8[4096]{0}', space=vmem, size = 0x1000, scoped, tag = 'input window, operand 1, single buffered']
    #allocation6 [shape = 's32[1]{0}', space=sflag, size = 0x4, scoped, tag = 'scoped memory for tpu_custom_call.1']
    #allocation7 [shape = 'u8[196608]{0}', space=vmem, size = 0x30000, scoped, tag = 'input window, operand 2, single buffered']
    #allocation8 [shape = 'u8[65536]{0}', space=vmem, size = 0x10000, scoped, tag = 'input window, operand 4, single buffered']
    #allocation9 [shape = 's32[1]{0}', space=sflag, size = 0x4, scoped, tag = 'scoped memory for tpu_custom_call.1']
    #allocation10 [shape = 'u8[65536]{0}', space=vmem, size = 0x10000, scoped, tag = 'input window, operand 5, single buffered']
    #allocation11 [shape = 'u8[65536]{0}', space=vmem, size = 0x10000, scoped, tag = 'input window, operand 6, single buffered']
    #allocation12 [shape = 's32[1]{0}', space=sflag, size = 0x4, scoped, tag = 'scoped memory for tpu_custom_call.1']
    #allocation13 [shape = 'u8[4096]{0}', space=vmem, size = 0x1000, scoped, tag = 'output window, operand 0, single buffered']
    %15 = vsyncpa [#allocation3], 0
    %16 = vsyncpa [#allocation6], 0
    %17 = vsyncpa [#allocation9], 0
    %18 = vsyncpa [#allocation12], 0
    %19 = vsyncpa [#allocation4], 0
    // Predicated region
    $region2: #{tpu_custom_call.1} parent=1 // pred_check
      _
    $region3: #{tpu_custom_call.1} parent=1 // pred_check_branch
      %21 = sbr.rel (0) target = $region5
    $region4: #{tpu_custom_call.1} parent=1 // pred_region
      %s23 = ssub.s32 128, 128
      %24 = vsyncadd [#allocation3], %s23
      %s26 = sshll.u32 [#allocation2], 4
      %s27 = int_to_ptr.vmem [resolvable:$true] %s26
      %29 = dma.hbm_to_vmem [thread:$0]  %s0, 128, %s27, [#allocation3]
    $region5: #{tpu_custom_call.1} parent=1 // pred_fallthru
      _
    // Predicated region
    $region6: #{tpu_custom_call.1} parent=1 // pred_check
      _
    $region7: #{tpu_custom_call.1} parent=1 // pred_check_branch
      %31 = sbr.rel (0) target = $region9
    $region8: #{tpu_custom_call.1} parent=1 // pred_region
      %s33 = ssub.s32 128, 128
      %34 = vsyncadd [#allocation6], %s33
      %s36 = sshll.u32 [#allocation5], 4
      %s37 = int_to_ptr.vmem [resolvable:$true] %s36
      %39 = dma.hbm_to_vmem [thread:$0]  %s1, 128, %s37, [#allocation6]
    $region9: #{tpu_custom_call.1} parent=1 // pred_fallthru
      _
    // Predicated region
    $region10: #{tpu_custom_call.1} parent=1 // pred_check
      _
    $region11: #{tpu_custom_call.1} parent=1 // pred_check_branch
      %41 = sbr.rel (0) target = $region13
    $region12: #{tpu_custom_call.1} parent=1 // pred_region
      %s43 = ssub.s32 6144, 6144
      %44 = vsyncadd [#allocation6], %s43
      %s45 = sshll.u32 [#allocation7], 4
      %s46 = int_to_ptr.vmem [resolvable:$true] %s45
      %51 = dma.hbm_to_vmem [thread:$0]  %s2, 6144, %s46, [#allocation6], 384, 384, 24
    $region13: #{tpu_custom_call.1} parent=1 // pred_fallthru
      _
    // Predicated region
    $region14: #{tpu_custom_call.1} parent=1 // pred_check
      _
    $region15: #{tpu_custom_call.1} parent=1 // pred_check_branch
      %53 = sbr.rel (0) target = $region17
    $region16: #{tpu_custom_call.1} parent=1 // pred_region
      _
    $region17: #{tpu_custom_call.1} parent=1 // pred_fallthru
      _
    // Predicated region
    $region18: #{tpu_custom_call.1} parent=1 // pred_check
      _
    $region19: #{tpu_custom_call.1} parent=1 // pred_check_branch
      %55 = sbr.rel (0) target = $region21
    $region20: #{tpu_custom_call.1} parent=1 // pred_region
      %s57 = ssub.s32 2048, 2048
      %58 = vsyncadd [#allocation9], %s57
      %s59 = sshll.u32 [#allocation8], 4
      %s60 = int_to_ptr.vmem [resolvable:$true] %s59
      %65 = dma.hbm_to_vmem [thread:$0]  %s4, 2048, %s60, [#allocation9], 128, 128, 8
    $region21: #{tpu_custom_call.1} parent=1 // pred_fallthru
      _
    // Predicated region
    $region22: #{tpu_custom_call.1} parent=1 // pred_check
      _
    $region23: #{tpu_custom_call.1} parent=1 // pred_check_branch
      %67 = sbr.rel (0) target = $region25
    $region24: #{tpu_custom_call.1} parent=1 // pred_region
      %s69 = ssub.s32 2048, 2048
      %70 = vsyncadd [#allocation9], %s69
      %s71 = sshll.u32 [#allocation10], 4
      %s72 = int_to_ptr.vmem [resolvable:$true] %s71
      %77 = dma.hbm_to_vmem [thread:$0]  %s5, 2048, %s72, [#allocation9], 128, 128, 8
    $region25: #{tpu_custom_call.1} parent=1 // pred_fallthru
      _
    // Predicated region
    $region26: #{tpu_custom_call.1} parent=1 // pred_check
      _
    $region27: #{tpu_custom_call.1} parent=1 // pred_check_branch
      %79 = sbr.rel (0) target = $region29
    $region28: #{tpu_custom_call.1} parent=1 // pred_region
      %s81 = ssub.s32 2048, 2048
      %82 = vsyncadd [#allocation12], %s81
      %s83 = sshll.u32 [#allocation11], 4
      %s84 = int_to_ptr.vmem [resolvable:$true] %s83
      %89 = dma.hbm_to_vmem [thread:$0]  %s6, 2048, %s84, [#allocation12], 128, 128, 8
    $region29: #{tpu_custom_call.1} parent=1 // pred_fallthru
      _
    // Predicated region
    $region30: #{tpu_custom_call.1} parent=1 // pred_check
      _
    $region31: #{tpu_custom_call.1} parent=1 // pred_check_branch
      %91 = sbr.rel (0) target = $region33
    $region32: #{tpu_custom_call.1} parent=1 // pred_region
      _
    $region33: #{tpu_custom_call.1} parent=1 // pred_fallthru
      _
    // Predicated region
    $region34: #{tpu_custom_call.1} parent=1 // pred_check
      _
    $region35: #{tpu_custom_call.1} parent=1 // pred_check_branch
      %93 = sbr.rel (0) target = $region37
    $region36: #{tpu_custom_call.1} parent=1 // pred_region
      _
    $region37: #{tpu_custom_call.1} parent=1 // pred_fallthru
      _
    // Predicated region
    $region38: #{tpu_custom_call.1} parent=1 // pred_check
      _
    $region39: #{tpu_custom_call.1} parent=1 // pred_check_branch
      %95 = sbr.rel (0) target = $region41
    $region40: #{tpu_custom_call.1} parent=1 // pred_region
      _
    $region41: #{tpu_custom_call.1} parent=1 // pred_fallthru
      _
    // Predicated region
    $region42: #{tpu_custom_call.1} parent=1 // pred_check
      _
    $region43: #{tpu_custom_call.1} parent=1 // pred_check_branch
      %97 = sbr.rel (0) target = $region45
    $region44: #{tpu_custom_call.1} parent=1 // pred_region
      %98 = dma.done [#allocation3], 128
    $region45: #{tpu_custom_call.1} parent=1 // pred_fallthru
      _
    // Predicated region
    $region46: #{tpu_custom_call.1} parent=1 // pred_check
      _
    $region47: #{tpu_custom_call.1} parent=1 // pred_check_branch
      %100 = sbr.rel (0) target = $region49
    $region48: #{tpu_custom_call.1} parent=1 // pred_region
      %101 = dma.done [#allocation6], 128
    $region49: #{tpu_custom_call.1} parent=1 // pred_fallthru
      _
    // Predicated region
    $region50: #{tpu_custom_call.1} parent=1 // pred_check
      _
    $region51: #{tpu_custom_call.1} parent=1 // pred_check_branch
      %103 = sbr.rel (0) target = $region53
    $region52: #{tpu_custom_call.1} parent=1 // pred_region
      %104 = dma.done [#allocation6], 6144
    $region53: #{tpu_custom_call.1} parent=1 // pred_fallthru
      _
    // Predicated region
    $region54: #{tpu_custom_call.1} parent=1 // pred_check
      _
    $region55: #{tpu_custom_call.1} parent=1 // pred_check_branch
      %106 = sbr.rel (0) target = $region57
    $region56: #{tpu_custom_call.1} parent=1 // pred_region
      %107 = dma.done [#allocation9], 2048
    $region57: #{tpu_custom_call.1} parent=1 // pred_fallthru
      _
    // Predicated region
    $region58: #{tpu_custom_call.1} parent=1 // pred_check
      _
    $region59: #{tpu_custom_call.1} parent=1 // pred_check_branch
      %109 = sbr.rel (0) target = $region61
    $region60: #{tpu_custom_call.1} parent=1 // pred_region
      %110 = dma.done [#allocation9], 2048
    $region61: #{tpu_custom_call.1} parent=1 // pred_fallthru
      _
    // Predicated region
    $region62: #{tpu_custom_call.1} parent=1 // pred_check
      _
    $region63: #{tpu_custom_call.1} parent=1 // pred_check_branch
      %112 = sbr.rel (0) target = $region65
    $region64: #{tpu_custom_call.1} parent=1 // pred_region
      %113 = dma.done [#allocation12], 2048
    $region65: #{tpu_custom_call.1} parent=1 // pred_fallthru
      _
    %v114 = vld [vmem:[#allocation2] sm:$0xff]
    %v115 = vld [vmem:[#allocation5] sm:$0xff]
    %v116 = vld [vmem:[#allocation7] sm:$0xff]
    %v117 = vld [vmem:[#allocation7 + $0x8] sm:$0xff]
    %v118 = vld [vmem:[#allocation7 + $0x10] sm:$0xff]
    %v119 = vld [vmem:[#allocation7 + $0x18] sm:$0xff]
    %v120 = vld [vmem:[#allocation7 + $0x20] sm:$0xff]
    %v121 = vld [vmem:[#allocation7 + $0x28] sm:$0xff]
    %v122 = vld [vmem:[#allocation7 + $0x30] sm:$0xff]
    %v123 = vld [vmem:[#allocation7 + $0x38] sm:$0xff]
    %v124 = vld [vmem:[#allocation7 + $0x40] sm:$0xff]
    %v125 = vld [vmem:[#allocation7 + $0x48] sm:$0xff]
    %v126 = vld [vmem:[#allocation7 + $0x50] sm:$0xff]
    %v127 = vld [vmem:[#allocation7 + $0x58] sm:$0xff]
    %v128 = vld [vmem:[#allocation7 + $0x60] sm:$0xff]
    %v129 = vld [vmem:[#allocation7 + $0x68] sm:$0xff]
    %v130 = vld [vmem:[#allocation7 + $0x70] sm:$0xff]
    %v131 = vld [vmem:[#allocation7 + $0x78] sm:$0xff]
    %v132 = vld [vmem:[#allocation7 + $0x80] sm:$0xff]
    %v133 = vld [vmem:[#allocation7 + $0x88] sm:$0xff]
    %v134 = vld [vmem:[#allocation7 + $0x90] sm:$0xff]
    %v135 = vld [vmem:[#allocation7 + $0x98] sm:$0xff]
    %v136 = vld [vmem:[#allocation7 + $0xa0] sm:$0xff]
    %v137 = vld [vmem:[#allocation7 + $0xa8] sm:$0xff]
    %v138 = vld [vmem:[#allocation7 + $0xb0] sm:$0xff]
    %v139 = vld [vmem:[#allocation7 + $0xb8] sm:$0xff]
    %v140 = vld [vmem:[#allocation7 + $0xc0] sm:$0xff]
    %v141 = vld [vmem:[#allocation7 + $0xc8] sm:$0xff]
    %v142 = vld [vmem:[#allocation7 + $0xd0] sm:$0xff]
    %v143 = vld [vmem:[#allocation7 + $0xd8] sm:$0xff]
    %v144 = vld [vmem:[#allocation7 + $0xe0] sm:$0xff]
    %v145 = vld [vmem:[#allocation7 + $0xe8] sm:$0xff]
    %v146 = vld [vmem:[#allocation7 + $0xf0] sm:$0xff]
    %v147 = vld [vmem:[#allocation7 + $0xf8] sm:$0xff]
    %v148 = vld [vmem:[#allocation7 + $0x100] sm:$0xff]
    %v149 = vld [vmem:[#allocation7 + $0x108] sm:$0xff]
    %v150 = vld [vmem:[#allocation7 + $0x110] sm:$0xff]
    %v151 = vld [vmem:[#allocation7 + $0x118] sm:$0xff]
    %v152 = vld [vmem:[#allocation7 + $0x120] sm:$0xff]
    %v153 = vld [vmem:[#allocation7 + $0x128] sm:$0xff]
    %v154 = vld [vmem:[#allocation7 + $0x130] sm:$0xff]
    %v155 = vld [vmem:[#allocation7 + $0x138] sm:$0xff]
    %v156 = vld [vmem:[#allocation7 + $0x140] sm:$0xff]
    %v157 = vld [vmem:[#allocation7 + $0x148] sm:$0xff]
    %v158 = vld [vmem:[#allocation7 + $0x150] sm:$0xff]
    %v159 = vld [vmem:[#allocation7 + $0x158] sm:$0xff]
    %v160 = vld [vmem:[#allocation7 + $0x160] sm:$0xff]
    %v161 = vld [vmem:[#allocation7 + $0x168] sm:$0xff]
    %v162 = vld [vmem:[#allocation7 + $0x170] sm:$0xff]
    %v163 = vld [vmem:[#allocation7 + $0x178] sm:$0xff]
    %v164 = vld [vmem:[%s3] sm:$0x7]
    %v166 = vlaneseq
    %v167 = vshrl.u32 %v166, 7
    %v168 = vsub.s32 0, %v167
    %v169 = vrot.slane %v164, %v168
    %v170 = vlaneseq
    %v171 = vshrl.u32 %v170, 7
    %v172 = vsub.s32 1, %v171
    %v173 = vrot.slane %v164, %v172
    %v174 = vlaneseq
    %v175 = vshrl.u32 %v174, 7
    %v176 = vsub.s32 2, %v175
    %v177 = vrot.slane %v164, %v176
    %181 = vmatprep.subr.mxu0 %v162
    %182 = vmatpush1.msra.mxu0 %v161
    %183 = vmatprep.subr.mxu0 %v159
    %184 = vmatpush1.msra.mxu0 %v158
    %185 = vmatprep.subr.mxu0 %v156
    %186 = vmatpush1.msra.mxu0 %v155
    %187 = vmatprep.subr.mxu0 %v153
    %188 = vmatpush1.msra.mxu0 %v152
    %189 = vmatprep.subr.mxu0 %v150
    %190 = vmatpush1.msra.mxu0 %v149
    %191 = vmatprep.subr.mxu0 %v147
    %192 = vmatpush1.msra.mxu0 %v146
    %193 = vmatprep.subr.mxu0 %v144
    %194 = vmatpush1.msra.mxu0 %v143
    %195 = vmatprep.subr.mxu0 %v141
    %196 = vmatpush1.msra.mxu0 %v140
    %197 = vmatprep.subr.mxu0 %v138
    %198 = vmatpush1.msra.mxu0 %v137
    %199 = vmatprep.subr.mxu0 %v135
    %200 = vmatpush1.msra.mxu0 %v134
    %201 = vmatprep.subr.mxu0 %v132
    %202 = vmatpush1.msra.mxu0 %v131
    %203 = vmatprep.subr.mxu0 %v129
    %204 = vmatpush1.msra.mxu0 %v128
    %205 = vmatprep.subr.mxu0 %v126
    %206 = vmatpush1.msra.mxu0 %v125
    %207 = vmatprep.subr.mxu0 %v123
    %208 = vmatpush1.msra.mxu0 %v122
    %209 = vmatprep.subr.mxu0 %v120
    %210 = vmatpush1.msra.mxu0 %v119
    %211 = vmatprep.subr.mxu0 %v117
    %212 = vmatpush1.msra.mxu0 %v116
    %213 = vmatprep.subr.mxu0 0.0
    %214 = vmatpush2.msra.mxu0 0.0
    %215 = vmatprep.subr.mxu0 0.0
    %216 = vmatpush2.msra.mxu0 0.0
    %217 = vmatprep.subr.mxu0 0.0
    %218 = vmatpush2.msra.mxu0 0.0
    %219 = vmatprep.subr.mxu0 0.0
    %220 = vmatpush2.msra.mxu0 0.0
    %221 = vmatprep.subr.mxu0 0.0
    %222 = vmatpush2.msra.mxu0 0.0
    %223 = vmatprep.subr.mxu0 0.0
    %224 = vmatpush2.msra.mxu0 0.0
    %225 = vmatprep.subr.mxu0 0.0
    %226 = vmatpush2.msra.mxu0 0.0
    %227 = vmatprep.subr.mxu0 0.0
    %228 = vmatpush2.msra.mxu0 0.0
    %229 = vmatprep.subr.mxu0 0.0
    %230 = vmatpush2.msra.mxu0 0.0
    %231 = vmatprep.subr.mxu0 0.0
    %232 = vmatpush2.msra.mxu0 0.0
    %233 = vmatprep.subr.mxu0 0.0
    %234 = vmatpush2.msra.mxu0 0.0
    %235 = vmatprep.subr.mxu0 0.0
    %236 = vmatpush2.msra.mxu0 0.0
    %237 = vmatprep.subr.mxu0 0.0
    %238 = vmatpush2.msra.mxu0 0.0
    %239 = vmatprep.subr.mxu0 0.0
    %240 = vmatpush2.msra.mxu0 0.0
    %241 = vmatprep.subr.mxu0 0.0
    %242 = vmatpush2.msra.mxu0 0.0
    %243 = vmatprep.subr.mxu0 0.0
    %244 = vmatpush2.msra.mxu0 0.0
    %245 = vmatprep.mubr.f32.mxu0 0.0
    %246 = vmatmul.mubr.f32.gmra.mxu0 %v114
    %v247 = vpop.f32.mrf.mxu0
    %v248 = vadd.f32 %v169, %v247
    %v249 = vpop.f32.mrf.mxu0
    %v250 = vadd.f32 %v173, %v249
    %251 = vmatprep.mubr.f32.mxu0 0.0
    %252 = vmatmul.mubr.f32.gmra.mxu0 %v115
    %v253 = vpop.f32.mrf.mxu0
    %v254 = vadd.f32 %v169, %v253
    %v255 = vpop.f32.mrf.mxu0
    %v256 = vadd.f32 %v173, %v255
    %257 = vdwg.mxu0
    %258 = vmatprep.subr.mxu0 0.0
    %259 = vmatpush1.msra.mxu0 %v163
    %260 = vmatprep.subr.mxu0 0.0
    %261 = vmatpush1.msra.mxu0 %v160
    %262 = vmatprep.subr.mxu0 0.0
    %263 = vmatpush1.msra.mxu0 %v157
    %264 = vmatprep.subr.mxu0 0.0
    %265 = vmatpush1.msra.mxu0 %v154
    %266 = vmatprep.subr.mxu0 0.0
    %267 = vmatpush1.msra.mxu0 %v151
    %268 = vmatprep.subr.mxu0 0.0
    %269 = vmatpush1.msra.mxu0 %v148
    %270 = vmatprep.subr.mxu0 0.0
    %271 = vmatpush1.msra.mxu0 %v145
    %272 = vmatprep.subr.mxu0 0.0
    %273 = vmatpush1.msra.mxu0 %v142
    %274 = vmatprep.subr.mxu0 0.0
    %275 = vmatpush1.msra.mxu0 %v139
    %276 = vmatprep.subr.mxu0 0.0
    %277 = vmatpush1.msra.mxu0 %v136
    %278 = vmatprep.subr.mxu0 0.0
    %279 = vmatpush1.msra.mxu0 %v133
    %280 = vmatprep.subr.mxu0 0.0
    %281 = vmatpush1.msra.mxu0 %v130
    %282 = vmatprep.subr.mxu0 0.0
    %283 = vmatpush1.msra.mxu0 %v127
    %284 = vmatprep.subr.mxu0 0.0
    %285 = vmatpush1.msra.mxu0 %v124
    %286 = vmatprep.subr.mxu0 0.0
    %287 = vmatpush1.msra.mxu0 %v121
    %288 = vmatprep.subr.mxu0 0.0
    %289 = vmatpush1.msra.mxu0 %v118
    %290 = vmatprep.subr.mxu0 0.0
    %291 = vmatpush2.msra.mxu0 0.0
    %292 = vmatprep.subr.mxu0 0.0
    %293 = vmatpush2.msra.mxu0 0.0
    %294 = vmatprep.subr.mxu0 0.0
    %295 = vmatpush2.msra.mxu0 0.0
    %296 = vmatprep.subr.mxu0 0.0
    %297 = vmatpush2.msra.mxu0 0.0
    %298 = vmatprep.subr.mxu0 0.0
    %299 = vmatpush2.msra.mxu0 0.0
    %300 = vmatprep.subr.mxu0 0.0
    %301 = vmatpush2.msra.mxu0 0.0
    %302 = vmatprep.subr.mxu0 0.0
    %303 = vmatpush2.msra.mxu0 0.0
    %304 = vmatprep.subr.mxu0 0.0
    %305 = vmatpush2.msra.mxu0 0.0
    %306 = vmatprep.subr.mxu0 0.0
    %307 = vmatpush2.msra.mxu0 0.0
    %308 = vmatprep.subr.mxu0 0.0
    %309 = vmatpush2.msra.mxu0 0.0
    %310 = vmatprep.subr.mxu0 0.0
    %311 = vmatpush2.msra.mxu0 0.0
    %312 = vmatprep.subr.mxu0 0.0
    %313 = vmatpush2.msra.mxu0 0.0
    %314 = vmatprep.subr.mxu0 0.0
    %315 = vmatpush2.msra.mxu0 0.0
    %316 = vmatprep.subr.mxu0 0.0
    %317 = vmatpush2.msra.mxu0 0.0
    %318 = vmatprep.subr.mxu0 0.0
    %319 = vmatpush2.msra.mxu0 0.0
    %320 = vmatprep.subr.mxu0 0.0
    %321 = vmatpush2.msra.mxu0 0.0
    %322 = vmatprep.mubr.f32.mxu0 0.0
    %323 = vmatmul.mubr.f32.gmra.mxu0 %v114
    %v324 = vpop.f32.mrf.mxu0
    %v325 = vadd.f32 %v177, %v324
    %v326 = vpop.f32.mrf.mxu0
    %327 = vmatprep.mubr.f32.mxu0 0.0
    %328 = vmatmul.mubr.f32.gmra.mxu0 %v115
    %v329 = vpop.f32.mrf.mxu0
    %v330 = vadd.f32 %v177, %v329
    %v331 = vpop.f32.mrf.mxu0
    %332 = vdwg.mxu0
    %v333 = vsub.f32 %v250, %v256
    %v334 = vsub.f32 %v325, %v330
    %v335 = vld [vmem:[#allocation8] sm:$0xff]
    %v336 = vld [vmem:[#allocation8 + $0x8] sm:$0xff]
    %v337 = vld [vmem:[#allocation8 + $0x10] sm:$0xff]
    %v338 = vld [vmem:[#allocation8 + $0x18] sm:$0xff]
    %v339 = vld [vmem:[#allocation8 + $0x20] sm:$0xff]
    %v340 = vld [vmem:[#allocation8 + $0x28] sm:$0xff]
    %v341 = vld [vmem:[#allocation8 + $0x30] sm:$0xff]
    %v342 = vld [vmem:[#allocation8 + $0x38] sm:$0xff]
    %v343 = vld [vmem:[#allocation8 + $0x40] sm:$0xff]
    %v344 = vld [vmem:[#allocation8 + $0x48] sm:$0xff]
    %v345 = vld [vmem:[#allocation8 + $0x50] sm:$0xff]
    %v346 = vld [vmem:[#allocation8 + $0x58] sm:$0xff]
    %v347 = vld [vmem:[#allocation8 + $0x60] sm:$0xff]
    %v348 = vld [vmem:[#allocation8 + $0x68] sm:$0xff]
    %v349 = vld [vmem:[#allocation8 + $0x70] sm:$0xff]
    %v350 = vld [vmem:[#allocation8 + $0x78] sm:$0xff]
    %v351 = vmul.f32 %v248, %v333
    %v352 = vmul.f32 %v254, %v333
    %353 = vmatprep.subr.mxu0 0.0
    %354 = vmatpush1.msra.mxu0 %v350
    %355 = vmatprep.subr.mxu0 0.0
    %356 = vmatpush1.msra.mxu0 %v349
    %357 = vmatprep.subr.mxu0 0.0
    %358 = vmatpush1.msra.mxu0 %v348
    %359 = vmatprep.subr.mxu0 0.0
    %360 = vmatpush1.msra.mxu0 %v347
    %361 = vmatprep.subr.mxu0 0.0
    %362 = vmatpush1.msra.mxu0 %v346
    %363 = vmatprep.subr.mxu0 0.0
    %364 = vmatpush1.msra.mxu0 %v345
    %365 = vmatprep.subr.mxu0 0.0
    %366 = vmatpush1.msra.mxu0 %v344
    %367 = vmatprep.subr.mxu0 0.0
    %368 = vmatpush1.msra.mxu0 %v343
    %369 = vmatprep.subr.mxu0 0.0
    %370 = vmatpush1.msra.mxu0 %v342
    %371 = vmatprep.subr.mxu0 0.0
    %372 = vmatpush1.msra.mxu0 %v341
    %373 = vmatprep.subr.mxu0 0.0
    %374 = vmatpush1.msra.mxu0 %v340
    %375 = vmatprep.subr.mxu0 0.0
    %376 = vmatpush1.msra.mxu0 %v339
    %377 = vmatprep.subr.mxu0 0.0
    %378 = vmatpush1.msra.mxu0 %v338
    %379 = vmatprep.subr.mxu0 0.0
    %380 = vmatpush1.msra.mxu0 %v337
    %381 = vmatprep.subr.mxu0 0.0
    %382 = vmatpush1.msra.mxu0 %v336
    %383 = vmatprep.subr.mxu0 0.0
    %384 = vmatpush1.msra.mxu0 %v335
    %385 = vmatprep.subr.mxu0 0.0
    %386 = vmatpush2.msra.mxu0 0.0
    %387 = vmatprep.subr.mxu0 0.0
    %388 = vmatpush2.msra.mxu0 0.0
    %389 = vmatprep.subr.mxu0 0.0
    %390 = vmatpush2.msra.mxu0 0.0
    %391 = vmatprep.subr.mxu0 0.0
    %392 = vmatpush2.msra.mxu0 0.0
    %393 = vmatprep.subr.mxu0 0.0
    %394 = vmatpush2.msra.mxu0 0.0
    %395 = vmatprep.subr.mxu0 0.0
    %396 = vmatpush2.msra.mxu0 0.0
    %397 = vmatprep.subr.mxu0 0.0
    %398 = vmatpush2.msra.mxu0 0.0
    %399 = vmatprep.subr.mxu0 0.0
    %400 = vmatpush2.msra.mxu0 0.0
    %401 = vmatprep.subr.mxu0 0.0
    %402 = vmatpush2.msra.mxu0 0.0
    %403 = vmatprep.subr.mxu0 0.0
    %404 = vmatpush2.msra.mxu0 0.0
    %405 = vmatprep.subr.mxu0 0.0
    %406 = vmatpush2.msra.mxu0 0.0
    %407 = vmatprep.subr.mxu0 0.0
    %408 = vmatpush2.msra.mxu0 0.0
    %409 = vmatprep.subr.mxu0 0.0
    %410 = vmatpush2.msra.mxu0 0.0
    %411 = vmatprep.subr.mxu0 0.0
    %412 = vmatpush2.msra.mxu0 0.0
    %413 = vmatprep.subr.mxu0 0.0
    %414 = vmatpush2.msra.mxu0 0.0
    %415 = vmatprep.subr.mxu0 0.0
    %416 = vmatpush2.msra.mxu0 0.0
    %417 = vmatprep.mubr.f32.mxu0 0.0
    %418 = vmatmul.mubr.f32.gmra.mxu0 %v351
    %v419 = vpop.f32.mrf.mxu0
    %v420 = vadd.f32 0.0, %v419
    %v421 = vpop.f32.mrf.mxu0
    %422 = vmatprep.mubr.f32.mxu0 0.0
    %423 = vmatmul.mubr.f32.gmra.mxu0 %v352
    %v424 = vpop.f32.mrf.mxu0
    %v425 = vadd.f32 0.0, %v424
    %v426 = vpop.f32.mrf.mxu0
    %427 = vdwg.mxu0
    %v428 = vxor.u32 %v420, 2147483648
    %v429 = vxor.u32 %v425, 2147483648
    %v430 = vmul.f32 %v428, 1.442695
    %v431 = vpow.pop %v430
    %v432 = vmul.f32 %v429, 1.442695
    %v433 = vpow.pop %v432
    %v434 = vadd.f32 %v431, 1.0
    %v435 = vadd.f32 %v433, 1.0
    %v436 = vrcp.pop %v434
    %v437 = vmul.f32 1.0, %v436
    %v438 = vrcp.pop %v435
    %v439 = vmul.f32 1.0, %v438
    %v440 = vmul.f32 %v437, %v334
    %v441 = vmul.f32 %v439, %v334
    %v442 = vadd.f32 %v330, %v440
    %v443 = vadd.f32 %v330, %v441
    %v444 = vld [vmem:[#allocation11] sm:$0xff]
    %v445 = vld [vmem:[#allocation11 + $0x8] sm:$0xff]
    %v446 = vld [vmem:[#allocation11 + $0x10] sm:$0xff]
    %v447 = vld [vmem:[#allocation11 + $0x18] sm:$0xff]
    %v448 = vld [vmem:[#allocation11 + $0x20] sm:$0xff]
    %v449 = vld [vmem:[#allocation11 + $0x28] sm:$0xff]
    %v450 = vld [vmem:[#allocation11 + $0x30] sm:$0xff]
    %v451 = vld [vmem:[#allocation11 + $0x38] sm:$0xff]
    %v452 = vld [vmem:[#allocation11 + $0x40] sm:$0xff]
    %v453 = vld [vmem:[#allocation11 + $0x48] sm:$0xff]
    %v454 = vld [vmem:[#allocation11 + $0x50] sm:$0xff]
    %v455 = vld [vmem:[#allocation11 + $0x58] sm:$0xff]
    %v456 = vld [vmem:[#allocation11 + $0x60] sm:$0xff]
    %v457 = vld [vmem:[#allocation11 + $0x68] sm:$0xff]
    %v458 = vld [vmem:[#allocation11 + $0x70] sm:$0xff]
    %v459 = vld [vmem:[#allocation11 + $0x78] sm:$0xff]
    %v460 = vld [vmem:[%s7] sm:$0x1]
    %v462 = vlaneseq
    %v463 = vshrl.u32 %v462, 7
    %v464 = vsub.s32 0, %v463
    %v465 = vrot.slane %v460, %v464
    %467 = vmatprep.subr.mxu0 0.0
    %468 = vmatpush1.msra.mxu0 %v459
    %469 = vmatprep.subr.mxu0 0.0
    %470 = vmatpush1.msra.mxu0 %v458
    %471 = vmatprep.subr.mxu0 0.0
    %472 = vmatpush1.msra.mxu0 %v457
    %473 = vmatprep.subr.mxu0 0.0
    %474 = vmatpush1.msra.mxu0 %v456
    %475 = vmatprep.subr.mxu0 0.0
    %476 = vmatpush1.msra.mxu0 %v455
    %477 = vmatprep.subr.mxu0 0.0
    %478 = vmatpush1.msra.mxu0 %v454
    %479 = vmatprep.subr.mxu0 0.0
    %480 = vmatpush1.msra.mxu0 %v453
    %481 = vmatprep.subr.mxu0 0.0
    %482 = vmatpush1.msra.mxu0 %v452
    %483 = vmatprep.subr.mxu0 0.0
    %484 = vmatpush1.msra.mxu0 %v451
    %485 = vmatprep.subr.mxu0 0.0
    %486 = vmatpush1.msra.mxu0 %v450
    %487 = vmatprep.subr.mxu0 0.0
    %488 = vmatpush1.msra.mxu0 %v449
    %489 = vmatprep.subr.mxu0 0.0
    %490 = vmatpush1.msra.mxu0 %v448
    %491 = vmatprep.subr.mxu0 0.0
    %492 = vmatpush1.msra.mxu0 %v447
    %493 = vmatprep.subr.mxu0 0.0
    %494 = vmatpush1.msra.mxu0 %v446
    %495 = vmatprep.subr.mxu0 0.0
    %496 = vmatpush1.msra.mxu0 %v445
    %497 = vmatprep.subr.mxu0 0.0
    %498 = vmatpush1.msra.mxu0 %v444
    %499 = vmatprep.subr.mxu0 0.0
    %500 = vmatpush2.msra.mxu0 0.0
    %501 = vmatprep.subr.mxu0 0.0
    %502 = vmatpush2.msra.mxu0 0.0
    %503 = vmatprep.subr.mxu0 0.0
    %504 = vmatpush2.msra.mxu0 0.0
    %505 = vmatprep.subr.mxu0 0.0
    %506 = vmatpush2.msra.mxu0 0.0
    %507 = vmatprep.subr.mxu0 0.0
    %508 = vmatpush2.msra.mxu0 0.0
    %509 = vmatprep.subr.mxu0 0.0
    %510 = vmatpush2.msra.mxu0 0.0
    %511 = vmatprep.subr.mxu0 0.0
    %512 = vmatpush2.msra.mxu0 0.0
    %513 = vmatprep.subr.mxu0 0.0
    %514 = vmatpush2.msra.mxu0 0.0
    %515 = vmatprep.subr.mxu0 0.0
    %516 = vmatpush2.msra.mxu0 0.0
    %517 = vmatprep.subr.mxu0 0.0
    %518 = vmatpush2.msra.mxu0 0.0
    %519 = vmatprep.subr.mxu0 0.0
    %520 = vmatpush2.msra.mxu0 0.0
    %521 = vmatprep.subr.mxu0 0.0
    %522 = vmatpush2.msra.mxu0 0.0
    %523 = vmatprep.subr.mxu0 0.0
    %524 = vmatpush2.msra.mxu0 0.0
    %525 = vmatprep.subr.mxu0 0.0
    %526 = vmatpush2.msra.mxu0 0.0
    %527 = vmatprep.subr.mxu0 0.0
    %528 = vmatpush2.msra.mxu0 0.0
    %529 = vmatprep.subr.mxu0 0.0
    %530 = vmatpush2.msra.mxu0 0.0
    %531 = vmatprep.mubr.f32.mxu0 0.0
    %532 = vmatmul.mubr.f32.gmra.mxu0 %v442
    %v533 = vpop.f32.mrf.mxu0
    %v534 = vadd.f32 %v465, %v533
    %v535 = vpop.f32.mrf.mxu0
    %536 = vmatprep.mubr.f32.mxu0 0.0
    %537 = vmatmul.mubr.f32.gmra.mxu0 %v443
    %v538 = vpop.f32.mrf.mxu0
    %v539 = vadd.f32 %v465, %v538
    %v540 = vpop.f32.mrf.mxu0
    %541 = vdwg.mxu0
    %v542 = vadd.f32 %v534, %v114
    %v543 = vadd.f32 %v539, %v115
    %v544 = vld [vmem:[#allocation10] sm:$0xff]
    %v545 = vld [vmem:[#allocation10 + $0x8] sm:$0xff]
    %v546 = vld [vmem:[#allocation10 + $0x10] sm:$0xff]
    %v547 = vld [vmem:[#allocation10 + $0x18] sm:$0xff]
    %v548 = vld [vmem:[#allocation10 + $0x20] sm:$0xff]
    %v549 = vld [vmem:[#allocation10 + $0x28] sm:$0xff]
    %v550 = vld [vmem:[#allocation10 + $0x30] sm:$0xff]
    %v551 = vld [vmem:[#allocation10 + $0x38] sm:$0xff]
    %v552 = vld [vmem:[#allocation10 + $0x40] sm:$0xff]
    %v553 = vld [vmem:[#allocation10 + $0x48] sm:$0xff]
    %v554 = vld [vmem:[#allocation10 + $0x50] sm:$0xff]
    %v555 = vld [vmem:[#allocation10 + $0x58] sm:$0xff]
    %v556 = vld [vmem:[#allocation10 + $0x60] sm:$0xff]
    %v557 = vld [vmem:[#allocation10 + $0x68] sm:$0xff]
    %v558 = vld [vmem:[#allocation10 + $0x70] sm:$0xff]
    %v559 = vld [vmem:[#allocation10 + $0x78] sm:$0xff]
    %560 = vmatprep.subr.mxu0 0.0
    %561 = vmatpush1.msra.mxu0 %v559
    %562 = vmatprep.subr.mxu0 0.0
    %563 = vmatpush1.msra.mxu0 %v558
    %564 = vmatprep.subr.mxu0 0.0
    %565 = vmatpush1.msra.mxu0 %v557
    %566 = vmatprep.subr.mxu0 0.0
    %567 = vmatpush1.msra.mxu0 %v556
    %568 = vmatprep.subr.mxu0 0.0
    %569 = vmatpush1.msra.mxu0 %v555
    %570 = vmatprep.subr.mxu0 0.0
    %571 = vmatpush1.msra.mxu0 %v554
    %572 = vmatprep.subr.mxu0 0.0
    %573 = vmatpush1.msra.mxu0 %v553
    %574 = vmatprep.subr.mxu0 0.0
    %575 = vmatpush1.msra.mxu0 %v552
    %576 = vmatprep.subr.mxu0 0.0
    %577 = vmatpush1.msra.mxu0 %v551
    %578 = vmatprep.subr.mxu0 0.0
    %579 = vmatpush1.msra.mxu0 %v550
    %580 = vmatprep.subr.mxu0 0.0
    %581 = vmatpush1.msra.mxu0 %v549
    %582 = vmatprep.subr.mxu0 0.0
    %583 = vmatpush1.msra.mxu0 %v548
    %584 = vmatprep.subr.mxu0 0.0
    %585 = vmatpush1.msra.mxu0 %v547
    %586 = vmatprep.subr.mxu0 0.0
    %587 = vmatpush1.msra.mxu0 %v546
    %588 = vmatprep.subr.mxu0 0.0
    %589 = vmatpush1.msra.mxu0 %v545
    %590 = vmatprep.subr.mxu0 0.0
    %591 = vmatpush1.msra.mxu0 %v544
    %592 = vmatprep.subr.mxu0 0.0
    %593 = vmatpush2.msra.mxu0 0.0
    %594 = vmatprep.subr.mxu0 0.0
    %595 = vmatpush2.msra.mxu0 0.0
    %596 = vmatprep.subr.mxu0 0.0
    %597 = vmatpush2.msra.mxu0 0.0
    %598 = vmatprep.subr.mxu0 0.0
    %599 = vmatpush2.msra.mxu0 0.0
    %600 = vmatprep.subr.mxu0 0.0
    %601 = vmatpush2.msra.mxu0 0.0
    %602 = vmatprep.subr.mxu0 0.0
    %603 = vmatpush2.msra.mxu0 0.0
    %604 = vmatprep.subr.mxu0 0.0
    %605 = vmatpush2.msra.mxu0 0.0
    %606 = vmatprep.subr.mxu0 0.0
    %607 = vmatpush2.msra.mxu0 0.0
    %608 = vmatprep.subr.mxu0 0.0
    %609 = vmatpush2.msra.mxu0 0.0
    %610 = vmatprep.subr.mxu0 0.0
    %611 = vmatpush2.msra.mxu0 0.0
    %612 = vmatprep.subr.mxu0 0.0
    %613 = vmatpush2.msra.mxu0 0.0
    %614 = vmatprep.subr.mxu0 0.0
    %615 = vmatpush2.msra.mxu0 0.0
    %616 = vmatprep.subr.mxu0 0.0
    %617 = vmatpush2.msra.mxu0 0.0
    %618 = vmatprep.subr.mxu0 0.0
    %619 = vmatpush2.msra.mxu0 0.0
    %620 = vmatprep.subr.mxu0 0.0
    %621 = vmatpush2.msra.mxu0 0.0
    %622 = vmatprep.subr.mxu0 0.0
    %623 = vmatpush2.msra.mxu0 0.0
    %624 = vmatprep.mubr.f32.mxu0 0.0
    %625 = vmatmul.mubr.f32.gmra.mxu0 %v542
    %v626 = vpop.f32.mrf.mxu0
    %v627 = vadd.f32 0.0, %v626
    %v628 = vpop.f32.mrf.mxu0
    %629 = vmatprep.mubr.f32.mxu0 0.0
    %630 = vmatmul.mubr.f32.gmra.mxu0 %v543
    %v631 = vpop.f32.mrf.mxu0
    %v632 = vadd.f32 0.0, %v631
    %v633 = vpop.f32.mrf.mxu0
    %634 = vdwg.mxu0
    %v635 = vsub.f32 %v542, %v627
    %v636 = vsub.f32 %v543, %v632
    %v637 = vmul.f32 %v635, %v635
    %v638 = vmul.f32 %v636, %v636
    %639 = vmatprep.subr.mxu0 0.0
    %640 = vmatpush1.msra.mxu0 %v559
    %641 = vmatprep.subr.mxu0 0.0
    %642 = vmatpush1.msra.mxu0 %v558
    %643 = vmatprep.subr.mxu0 0.0
    %644 = vmatpush1.msra.mxu0 %v557
    %645 = vmatprep.subr.mxu0 0.0
    %646 = vmatpush1.msra.mxu0 %v556
    %647 = vmatprep.subr.mxu0 0.0
    %648 = vmatpush1.msra.mxu0 %v555
    %649 = vmatprep.subr.mxu0 0.0
    %650 = vmatpush1.msra.mxu0 %v554
    %651 = vmatprep.subr.mxu0 0.0
    %652 = vmatpush1.msra.mxu0 %v553
    %653 = vmatprep.subr.mxu0 0.0
    %654 = vmatpush1.msra.mxu0 %v552
    %655 = vmatprep.subr.mxu0 0.0
    %656 = vmatpush1.msra.mxu0 %v551
    %657 = vmatprep.subr.mxu0 0.0
    %658 = vmatpush1.msra.mxu0 %v550
    %659 = vmatprep.subr.mxu0 0.0
    %660 = vmatpush1.msra.mxu0 %v549
    %661 = vmatprep.subr.mxu0 0.0
    %662 = vmatpush1.msra.mxu0 %v548
    %663 = vmatprep.subr.mxu0 0.0
    %664 = vmatpush1.msra.mxu0 %v547
    %665 = vmatprep.subr.mxu0 0.0
    %666 = vmatpush1.msra.mxu0 %v546
    %667 = vmatprep.subr.mxu0 0.0
    %668 = vmatpush1.msra.mxu0 %v545
    %669 = vmatprep.subr.mxu0 0.0
    %670 = vmatpush1.msra.mxu0 %v544
    %671 = vmatprep.subr.mxu0 0.0
    %672 = vmatpush2.msra.mxu0 0.0
    %673 = vmatprep.subr.mxu0 0.0
    %674 = vmatpush2.msra.mxu0 0.0
    %675 = vmatprep.subr.mxu0 0.0
    %676 = vmatpush2.msra.mxu0 0.0
    %677 = vmatprep.subr.mxu0 0.0
    %678 = vmatpush2.msra.mxu0 0.0
    %679 = vmatprep.subr.mxu0 0.0
    %680 = vmatpush2.msra.mxu0 0.0
    %681 = vmatprep.subr.mxu0 0.0
    %682 = vmatpush2.msra.mxu0 0.0
    %683 = vmatprep.subr.mxu0 0.0
    %684 = vmatpush2.msra.mxu0 0.0
    %685 = vmatprep.subr.mxu0 0.0
    %686 = vmatpush2.msra.mxu0 0.0
    %687 = vmatprep.subr.mxu0 0.0
    %688 = vmatpush2.msra.mxu0 0.0
    %689 = vmatprep.subr.mxu0 0.0
    %690 = vmatpush2.msra.mxu0 0.0
    %691 = vmatprep.subr.mxu0 0.0
    %692 = vmatpush2.msra.mxu0 0.0
    %693 = vmatprep.subr.mxu0 0.0
    %694 = vmatpush2.msra.mxu0 0.0
    %695 = vmatprep.subr.mxu0 0.0
    %696 = vmatpush2.msra.mxu0 0.0
    %697 = vmatprep.subr.mxu0 0.0
    %698 = vmatpush2.msra.mxu0 0.0
    %699 = vmatprep.subr.mxu0 0.0
    %700 = vmatpush2.msra.mxu0 0.0
    %701 = vmatprep.subr.mxu0 0.0
    %702 = vmatpush2.msra.mxu0 0.0
    %703 = vmatprep.mubr.f32.mxu0 0.0
    %704 = vmatmul.mubr.f32.gmra.mxu0 %v637
    %v705 = vpop.f32.mrf.mxu0
    %v706 = vadd.f32 1e-05, %v705
    %v707 = vpop.f32.mrf.mxu0
    %708 = vmatprep.mubr.f32.mxu0 0.0
    %709 = vmatmul.mubr.f32.gmra.mxu0 %v638
    %v710 = vpop.f32.mrf.mxu0
    %v711 = vadd.f32 1e-05, %v710
    %v712 = vpop.f32.mrf.mxu0
    %713 = vdwg.mxu0
    %v714 = vrsqrt.pop %v706
    %v715 = vrsqrt.pop %v711
    %v716 = vmul.f32 %v635, %v714
    %v717 = vmul.f32 %v636, %v715
    %v718 = vld [vmem:[%s8] sm:$0x1]
    %v720 = vlaneseq
    %v721 = vshrl.u32 %v720, 7
    %v722 = vsub.s32 0, %v721
    %v723 = vrot.slane %v718, %v722
    %v725 = vmul.f32 %v716, %v723
    %v726 = vmul.f32 %v717, %v723
    %v727 = vld [vmem:[%s9] sm:$0x1]
    %v729 = vlaneseq
    %v730 = vshrl.u32 %v729, 7
    %v731 = vsub.s32 0, %v730
    %v732 = vrot.slane %v727, %v731
    %v734 = vadd.f32 %v725, %v732
    %v735 = vadd.f32 %v726, %v732
    %v736 = vadd.f32 %v734, %v735
    %737 = vst [vmem:[#allocation13] sm:$0xff] %v736
    // Predicated region
    $region66: #{tpu_custom_call.1} parent=1 // pred_check
      _
    $region67: #{tpu_custom_call.1} parent=1 // pred_check_branch
      %739 = sbr.rel (0) target = $region69
    $region68: #{tpu_custom_call.1} parent=1 // pred_region
      %s741 = ssub.s32 128, 128
      %742 = vsyncadd [#allocation4], %s741
      %s744 = sshll.u32 [#allocation13], 4
      %s745 = int_to_ptr.vmem [resolvable:$true] %s744
      %747 = dma.vmem_to_hbm [thread:$0]  %s745, 128, %s10, [#allocation4]
    $region69: #{tpu_custom_call.1} parent=1 // pred_fallthru
      _
    // Predicated region
    $region70: #{tpu_custom_call.1} parent=1 // pred_check
      _
    $region71: #{tpu_custom_call.1} parent=1 // pred_check_branch
      %749 = sbr.rel (0) target = $region73
    $region72: #{tpu_custom_call.1} parent=1 // pred_region
      %750 = dma.done [#allocation4], 128
    $region73: #{tpu_custom_call.1} parent=1 // pred_fallthru
      _
    %751 = vsyncpa [#allocation3], 1
    %752 = vsyncpa [#allocation6], 1
    %753 = vsyncpa [#allocation9], 1
    %754 = vsyncpa [#allocation12], 1
    %755 = vsyncpa [#allocation4], 1

</llo_original>
